<compile_context>
chip_gen: v6e
topology: v6e:2x2x1
jax: 0.10.0
libtpu: 0.0.40
codegen_flags: <defaults>
</compile_context>

<pallas_src>
import jax
import jax.numpy as jnp
import numpy as np
from jax.experimental import pallas as pl
from jax.experimental.pallas import tpu as pltpu

EMBED = 64   # input_dim (module default)
OUT = 2      # output_dim (module default)


def _logreg_softmax_kernel(x_ref, w_ref, b_ref, o_ref):
    # (TILE_N, 64) @ (64, 2) on the MXU, f32 accumulation, + bias row.
    logits = (jnp.dot(x_ref[...], w_ref[...],
                      preferred_element_type=jnp.float32)
              + b_ref[...])                                  # (TILE_N, 2)

    # Two-class softmax == sigmoid of the logit difference:
    #   p1 = 1 / (1 + exp(l0 - l1)),  p0 = 1 - p1.
    # Avoids cross-lane (XLU) max/sum reductions; exp goes to the EUP slot.
    d = logits[:, 1:2] - logits[:, 0:1]                      # (TILE_N, 1)
    p1 = 1.0 / (1.0 + jnp.exp(-d))
    p1_b = jnp.broadcast_to(p1, logits.shape)
    p0_b = jnp.broadcast_to(1.0 - p1, logits.shape)
    col = jax.lax.broadcasted_iota(jnp.int32, logits.shape, 1)
    o_ref[...] = jnp.where(col == 1, p1_b, p0_b).astype(o_ref.dtype)


def logistic_regression_classifier(x, weight, bias, *, tile_n=1024):
    """softmax(x @ weight.T + bias, axis=-1) with nn.Linear-layout params.

    x:      (N, 64) float32
    weight: (2, 64)  (nn.Linear weight, (out_features, in_features))
    bias:   (2,)
    """
    n, d = x.shape
    out_dim = weight.shape[0]
    assert weight.shape == (out_dim, d) and bias.shape == (out_dim,)
    assert out_dim == OUT, "kernel's sigmoid-softmax path assumes 2 classes"

    w_t = weight.T                        # (in, out) for row-major MXU matmul
    b_row = bias[None, :]                 # (1, out)

    # Keep the tile a multiple of 8 sublanes (or the full extent for tiny N).
    tile_n = n if n < tile_n else tile_n
    grid = (pl.cdiv(n, tile_n),)

    itemsize = jnp.dtype(x.dtype).itemsize
    cost = pl.CostEstimate(
        flops=2 * n * d * out_dim,
        transcendentals=n,                                    # one exp per row
        bytes_accessed=(n * d * itemsize                      # read x
                        + n * out_dim * 4                     # write probs
                        + d * out_dim * 4 + out_dim * 4),     # weights + bias
    )

    return pl.pallas_call(
        _logreg_softmax_kernel,
        out_shape=jax.ShapeDtypeStruct((n, out_dim), jnp.float32),
        grid=grid,
        in_specs=[
            pl.BlockSpec((tile_n, d), lambda i: (i, 0)),      # x tiles (pipelined)
            pl.BlockSpec((d, out_dim), lambda i: (0, 0)),     # weight (resident)
            pl.BlockSpec((1, out_dim), lambda i: (0, 0)),     # bias (resident)
        ],
        out_specs=pl.BlockSpec((tile_n, out_dim), lambda i: (i, 0)),
        compiler_params=pltpu.CompilerParams(
            dimension_semantics=("parallel",)),               # v7x: shard N over TCs
        cost_estimate=cost,
    )(x, w_t, b_row)


def reference(x, weight, bias):
    """Plain-JAX replica of the PyTorch forward."""
    return jax.nn.softmax(x @ weight.T + bias, axis=-1)


if __name__ == "__main__":
    key = jax.random.PRNGKey(0)
    k_x, k_w, k_b = jax.random.split(key, 3)

    N = 16                                           # small demo batch of tokens
    x = jax.random.normal(k_x, (N, EMBED), jnp.float32)
    weight = 0.1 * jax.random.normal(k_w, (OUT, EMBED), jnp.float32)
    bias = 0.1 * jax.random.normal(k_b, (OUT,), jnp.float32)

    # tile_n=8 so the demo exercises a multi-step, pipelined grid.
    out = logistic_regression_classifier(x, weight, bias, tile_n=8)
    out = jax.block_until_ready(out)

    ref = reference(x, weight, bias)
    np.testing.assert_allclose(np.asarray(out), np.asarray(ref),
                               rtol=1e-5, atol=1e-6)
    assert out.shape == (N, OUT)
    np.testing.assert_allclose(np.asarray(out).sum(-1), np.ones(N),
                               rtol=1e-6, atol=1e-6)

    print("KERNEL_OK")
</pallas_src>

<mosaic_0001>
module attributes {stable_mosaic.version = 11 : i64} {
  func.func @_logreg_softmax_kernel(%arg0: i32, %arg1: memref<8x64xf32, #tpu.memory_space<vmem>>, %arg2: memref<64x2xf32, #tpu.memory_space<vmem>>, %arg3: memref<1x2xf32, #tpu.memory_space<vmem>>, %arg4: memref<8x2xf32, #tpu.memory_space<vmem>>) attributes {dimension_semantics = [#tpu.dimension_semantics<parallel>], iteration_bounds = array<i64: 2>, scalar_prefetch = 0 : i64, scratch_operands = 0 : i64, tpu.core_type = #tpu.core_type<tc>, window_params = [{transform_indices = @transform_0, window_bounds = array<i64: 8, 64>}, {pipeline_mode = #tpu.pipeline_mode<synchronous>, transform_indices = @transform_1, window_bounds = array<i64: 64, 2>}, {pipeline_mode = #tpu.pipeline_mode<synchronous>, transform_indices = @transform_2, window_bounds = array<i64: 1, 2>}, {transform_indices = @transform_3, window_bounds = array<i64: 8, 2>}]} {
    %c0 = arith.constant 0 : index
    %c0_0 = arith.constant 0 : index
    %0 = vector.load %arg1[%c0, %c0_0] : memref<8x64xf32, #tpu.memory_space<vmem>>, vector<8x64xf32>
    %c0_1 = arith.constant 0 : index
    %c0_2 = arith.constant 0 : index
    %1 = vector.load %arg2[%c0_1, %c0_2] : memref<64x2xf32, #tpu.memory_space<vmem>>, vector<64x2xf32>
    %cst = arith.constant dense<0.000000e+00> : vector<8x2xf32>
    %2 = tpu.matmul %0, %1, %cst {dimension_numbers = #tpu.dot_dimension_numbers<[1], [0], [0], [1], [0, 0, 1, 1], [], []>} : vector<8x64xf32>, vector<64x2xf32>, vector<8x2xf32> -> vector<8x2xf32>
    %c0_3 = arith.constant 0 : index
    %c0_4 = arith.constant 0 : index
    %3 = vector.load %arg3[%c0_3, %c0_4] : memref<1x2xf32, #tpu.memory_space<vmem>>, vector<1x2xf32>
    %4 = vector.broadcast %3 : vector<1x2xf32> to vector<8x2xf32>
    %5 = arith.addf %2, %4 : vector<8x2xf32>
    %6 = vector.extract_strided_slice %5 {offsets = [0, 1], sizes = [8, 1], strides = [1, 1]} : vector<8x2xf32> to vector<8x1xf32>
    %7 = vector.extract_strided_slice %5 {offsets = [0, 0], sizes = [8, 1], strides = [1, 1]} : vector<8x2xf32> to vector<8x1xf32>
    %8 = arith.subf %6, %7 : vector<8x1xf32>
    %cst_5 = arith.constant 0.000000e+00 : f32
    %9 = vector.broadcast %cst_5 : f32 to vector<8x1xf32>
    %10 = arith.subf %9, %8 : vector<8x1xf32>
    %11 = math.exp %10 : vector<8x1xf32>
    %cst_6 = arith.constant 1.000000e+00 : f32
    %12 = vector.broadcast %cst_6 : f32 to vector<8x1xf32>
    %13 = arith.addf %12, %11 : vector<8x1xf32>
    %cst_7 = arith.constant 1.000000e+00 : f32
    %14 = vector.broadcast %cst_7 : f32 to vector<8x1xf32>
    %15 = arith.divf %14, %13 : vector<8x1xf32>
    %16 = vector.shape_cast %15 : vector<8x1xf32> to vector<8x1xf32>
    %17 = vector.broadcast %16 : vector<8x1xf32> to vector<8x2xf32>
    %cst_8 = arith.constant 1.000000e+00 : f32
    %18 = vector.broadcast %cst_8 : f32 to vector<8x1xf32>
    %19 = arith.subf %18, %15 : vector<8x1xf32>
    %20 = vector.shape_cast %19 : vector<8x1xf32> to vector<8x1xf32>
    %21 = vector.broadcast %20 : vector<8x1xf32> to vector<8x2xf32>
    %22 = tpu.iota {dimensions = array<i32: 1>} : vector<8x2xi32>
    %c1_i32 = arith.constant 1 : i32
    %23 = vector.broadcast %c1_i32 : i32 to vector<8x2xi32>
    %24 = arith.cmpi eq, %22, %23 : vector<8x2xi32>
    %25 = arith.select %24, %17, %21 : vector<8x2xi1>, vector<8x2xf32>
    %c0_9 = arith.constant 0 : index
    %c0_10 = arith.constant 0 : index
    %26 = vector.load %arg4[%c0_9, %c0_10] : memref<8x2xf32, #tpu.memory_space<vmem>>, vector<8x2xf32>
    tpu.vector_store %arg4[%c0_9, %c0_10], %25 {strides = array<i32>} : memref<8x2xf32, #tpu.memory_space<vmem>>, vector<8x2xf32>,
    return
  }
  func.func @transform_0(%arg0: i32) -> (i32, i32) {
    %c0_i32 = arith.constant 0 : i32
    %c0_i32_0 = arith.constant 0 : i32
    return %arg0, %c0_i32 : i32, i32
  }
  func.func @transform_1(%arg0: i32) -> (i32, i32) {
    %c0_i32 = arith.constant 0 : i32
    %c0_i32_0 = arith.constant 0 : i32
    %c0_i32_1 = arith.constant 0 : i32
    return %c0_i32, %c0_i32_0 : i32, i32
  }
  func.func @transform_2(%arg0: i32) -> (i32, i32) {
    %c0_i32 = arith.constant 0 : i32
    %c0_i32_0 = arith.constant 0 : i32
    %c0_i32_1 = arith.constant 0 : i32
    return %c0_i32, %c0_i32_0 : i32, i32
  }
  func.func @transform_3(%arg0: i32) -> (i32, i32) {
    %c0_i32 = arith.constant 0 : i32
    %c0_i32_0 = arith.constant 0 : i32
    return %arg0, %c0_i32 : i32, i32
  }
}

</mosaic_0001>

<llo_original>
// kernel: tpu_custom_call.1
$region0: #{tpu_custom_call.1}
  #allocation0 [shape = 'u32[]', space=smem, size = 0x4, offset = 0x4, fixed_abs, tag = 'smem constant byte address 0x4 - core index']
  #allocation1 [shape = 'u32[144,128]{1,0:T(1,128)}', space=vmem, size = 0x12000, scoped, tag = 'internal scratch']
  %s0 = inlined_call_operand.vmem [shape: f32[16,64], index: 0, kind: input, shape index: {}]
  %s1 = inlined_call_operand.vmem [shape: f32[64,2], index: 1, kind: input, shape index: {}]
  %s2 = inlined_call_operand.vmem [shape: f32[1,2], index: 2, kind: input, shape index: {}]
  %s3 = inlined_call_operand.vmem [shape: f32[16,2], index: 3, kind: output, shape index: {}]
  %s4 = sld [smem:[#allocation0]]
  $region45: #{tpu_custom_call.1} parent=0
    _
  %s6 = ssub.s32 1, %s4
  %s7 = scalar_select 0, %s6, %s4
  loop: start=0, step=1, limit=4
  $region2: #{tpu_custom_call.1} parent=0 // loop_pre_header
    _
  $region3: #{tpu_custom_call.1} parent=0 // loop_header
    %s9 = sphi 0, %s13
    %p10 = scmp.ge.s32.totalorder %s9, 4
    %s19 = sphi 0, %s21
    %s22 = sphi 0, %s19
    %s23 = sphi 0, %s22
    %s39 = sphi 0, %s23
    %s43 = sphi 0, %s43
    %s45 = sphi 0, %s43
    %s46 = sphi 0, %s45
    %s60 = sphi 0, %s46
    %s64 = sphi 0, %s64
    %s66 = sphi 0, %s64
    %s67 = sphi 0, %s66
    %s81 = sphi 0, %s67
    %s87 = sphi 0, %s89
    %s90 = sphi 0, %s87
    %s91 = sphi 0, %s90
    %s107 = sphi 0, %s91
  $region4: #{tpu_custom_call.1} parent=0 // loop_header_branch
    %12 = sbr.rel (%p10) target = $region8
  $region5: #{tpu_custom_call.1} parent=0 // loop_body
    %s14 = ssub.s32 %s9, 1
    %s15 = ssub.s32 %s9, 2
    %s16 = sadd.s32 %s9, 1
    %s17 = ssub.s32 %s9, %s16
    %p18 = scmp.eq.s32.totalorder %s17, 0
    %s20 = sadd.s32 %s19, 1
    %s21 = scalar_select %p18, %s19, %s20
    %p24 = pneg %p18
    %p25 = scmp.eq.s32.totalorder %s9, 1
    %p26 = por %p24, %p25
    %p27 = scmp.ne.s32.totalorder %s19, %s22
    %p28 = scmp.eq.s32.totalorder %s9, 0
    %p29 = por %p27, %p28
    %p30 = scmp.ne.s32.totalorder %s19, %s22
    %p31 = scmp.eq.s32.totalorder %s14, 1
    %p32 = por %p30, %p31
    %p33 = scmp.ne.s32.totalorder %s22, %s23
    %p34 = scmp.eq.s32.totalorder %s14, 0
    %p35 = por %p33, %p34
    %p36 = scmp.ne.s32.totalorder %s22, %s23
    %p37 = scmp.eq.s32.totalorder %s15, 1
    %p38 = por %p36, %p37
    %p40 = scmp.ne.s32.totalorder %s23, %s39
    %p41 = scmp.eq.s32.totalorder %s15, 0
    %p42 = por %p40, %p41
    %s44 = sadd.s32 %s43, 1
    %p47 = scmp.eq.s32.totalorder %s9, 1
    %p48 = scmp.ne.s32.totalorder %s43, %s45
    %p49 = scmp.eq.s32.totalorder %s9, 0
    %p50 = por %p48, %p49
    %p51 = scmp.ne.s32.totalorder %s43, %s45
    %p52 = scmp.eq.s32.totalorder %s14, 1
    %p53 = por %p51, %p52
    %p54 = scmp.ne.s32.totalorder %s45, %s46
    %p55 = scmp.eq.s32.totalorder %s14, 0
    %p56 = por %p54, %p55
    %p57 = scmp.ne.s32.totalorder %s45, %s46
    %p58 = scmp.eq.s32.totalorder %s15, 1
    %p59 = por %p57, %p58
    %p61 = scmp.ne.s32.totalorder %s46, %s60
    %p62 = scmp.eq.s32.totalorder %s15, 0
    %p63 = por %p61, %p62
    %s65 = sadd.s32 %s64, 1
    %p68 = scmp.eq.s32.totalorder %s9, 1
    %p69 = scmp.ne.s32.totalorder %s64, %s66
    %p70 = scmp.eq.s32.totalorder %s9, 0
    %p71 = por %p69, %p70
    %p72 = scmp.ne.s32.totalorder %s64, %s66
    %p73 = scmp.eq.s32.totalorder %s14, 1
    %p74 = por %p72, %p73
    %p75 = scmp.ne.s32.totalorder %s66, %s67
    %p76 = scmp.eq.s32.totalorder %s14, 0
    %p77 = por %p75, %p76
    %p78 = scmp.ne.s32.totalorder %s66, %s67
    %p79 = scmp.eq.s32.totalorder %s15, 1
    %p80 = por %p78, %p79
    %p82 = scmp.ne.s32.totalorder %s67, %s81
    %p83 = scmp.eq.s32.totalorder %s15, 0
    %p84 = por %p82, %p83
    %s85 = ssub.s32 %s9, %s16
    %p86 = scmp.eq.s32.totalorder %s85, 0
    %s88 = sadd.s32 %s87, 1
    %s89 = scalar_select %p86, %s87, %s88
    %p92 = pneg %p86
    %p93 = scmp.eq.s32.totalorder %s9, 1
    %p94 = por %p92, %p93
    %p95 = scmp.ne.s32.totalorder %s87, %s90
    %p96 = scmp.eq.s32.totalorder %s9, 0
    %p97 = por %p95, %p96
    %p98 = scmp.ne.s32.totalorder %s87, %s90
    %p99 = scmp.eq.s32.totalorder %s14, 1
    %p100 = por %p98, %p99
    %p101 = scmp.ne.s32.totalorder %s90, %s91
    %p102 = scmp.eq.s32.totalorder %s14, 0
    %p103 = por %p101, %p102
    %p104 = scmp.ne.s32.totalorder %s90, %s91
    %p105 = scmp.eq.s32.totalorder %s15, 1
    %p106 = por %p104, %p105
    %p108 = scmp.ne.s32.totalorder %s91, %s107
    %p109 = scmp.eq.s32.totalorder %s15, 0
    %p110 = por %p108, %p109
    %p111 = scmp.le.s32.totalorder 1, %s9
    %p112 = scmp.lt.s32.totalorder %s9, 3
    %p113 = pnand %p111, %p112
    %p114 = pneg %p113
    // Predicated region
    $region9: #{tpu_custom_call.1} parent=5 // pred_check
      _
    $region10: #{tpu_custom_call.1} parent=5 // pred_check_branch
      %116 = sbr.rel (%p113) target = $region12
    $region11: #{tpu_custom_call.1} parent=5 // pred_region
      %s117 = ssub.s32 %s9, 1
      // Predicated region
      $region13: #{tpu_custom_call.1} parent=11 // pred_check
        %p118 = pneg %p56
      $region14: #{tpu_custom_call.1} parent=11 // pred_check_branch
        %120 = sbr.rel (%p118) target = $region16
      $region15: #{tpu_custom_call.1} parent=11 // pred_region
        _
      $region16: #{tpu_custom_call.1} parent=11 // pred_fallthru
        _
      // Predicated region
      $region17: #{tpu_custom_call.1} parent=11 // pred_check
        %p121 = pneg %p77
      $region18: #{tpu_custom_call.1} parent=11 // pred_check_branch
        %123 = sbr.rel (%p121) target = $region20
      $region19: #{tpu_custom_call.1} parent=11 // pred_region
        _
      $region20: #{tpu_custom_call.1} parent=11 // pred_fallthru
        _
    $region12: #{tpu_custom_call.1} parent=5 // pred_fallthru
      _
    %p124 = scmp.lt.s32.totalorder %s9, 2
    // Predicated region
    $region21: #{tpu_custom_call.1} parent=5 // pred_check
      %p125 = pneg %p124
    $region22: #{tpu_custom_call.1} parent=5 // pred_check_branch
      %127 = sbr.rel (%p125) target = $region24
    $region23: #{tpu_custom_call.1} parent=5 // pred_region
      // Predicated region
      $region25: #{tpu_custom_call.1} parent=23 // pred_check
        %p128 = pneg %p29
      $region26: #{tpu_custom_call.1} parent=23 // pred_check_branch
        %130 = sbr.rel (%p128) target = $region28
      $region27: #{tpu_custom_call.1} parent=23 // pred_region
        %p131 = scmp.lt.s32.totalorder %s9, 1
        %s132 = scalar_select %p131, %s9, 1
        %s133 = smul.addr %s132, 8
        %s134 = scalar_lea.vmem %s0, %s133
      $region28: #{tpu_custom_call.1} parent=23 // pred_fallthru
        _
    $region24: #{tpu_custom_call.1} parent=5 // pred_fallthru
      _
    %p135 = scmp.le.s32.totalorder 1, %s9
    %p136 = scmp.lt.s32.totalorder %s9, 3
    %p137 = pnand %p135, %p136
    %p138 = pneg %p137
    // Predicated region
    $region29: #{tpu_custom_call.1} parent=5 // pred_check
      _
    $region30: #{tpu_custom_call.1} parent=5 // pred_check_branch
      %140 = sbr.rel (%p137) target = $region32
    $region31: #{tpu_custom_call.1} parent=5 // pred_region
      %s141 = ssub.s32 %s9, 1
      %p142 = scmp.lt.s32.totalorder %s14, 1
      %s143 = scalar_select %p142, %s14, 1
      %s144 = smul.addr %s143, 8
      %s145 = scalar_lea.vmem %s0, %s144
      %p146 = pneg %p35
      %p147 = pneg %p32
      %p148 = pneg %p56
      %p149 = pneg %p53
      %p150 = pneg %p77
      %p151 = pneg %p74
      %p152 = pneg %p103
      %p153 = pneg %p100
      %p154 = scmp.lt.s32.totalorder %s14, 1
      %s155 = scalar_select %p154, %s14, 1
      %s156 = smul.addr %s155, 8
      %s157 = scalar_lea.vmem %s3, %s156
      %p158 = scmp.lt.s32.totalorder %s14, 1
      %s159 = scalar_select %p158, %s14, 1
      %s160 = smul.addr %s159, 8
      %s161 = scalar_lea.vmem %s0, %s160
      %p162 = scmp.lt.s32.totalorder %s14, 1
      %s163 = scalar_select %p162, %s14, 1
      %s164 = smul.addr %s163, 8
      %s165 = scalar_lea.vmem %s3, %s164
      %v166 = vld [vmem:[%s161] sm:$0xff]
      %v167 = vld [vmem:[%s1] sm:$0xff]
      %v168 = vld [vmem:[%s1 + $0x8] sm:$0xff]
      %v169 = vld [vmem:[%s1 + $0x10] sm:$0xff]
      %v170 = vld [vmem:[%s1 + $0x18] sm:$0xff]
      %v171 = vld [vmem:[%s1 + $0x20] sm:$0xff]
      %v172 = vld [vmem:[%s1 + $0x28] sm:$0xff]
      %v173 = vld [vmem:[%s1 + $0x30] sm:$0xff]
      %v174 = vld [vmem:[%s1 + $0x38] sm:$0xff]
      %v175 = vld [vmem:[%s2] sm:$0x1]
      %v177 = vlaneseq
      %v178 = vshrl.u32 %v177, 7
      %v179 = vsub.s32 0, %v178
      %v180 = vrot.slane %v175, %v179
      %vm182 = vcmask 523264
      %v184 = vsel %vm182, %v166, 0
      %186 = vmatprep.subr.mxu0 0.0
      %187 = vmatpush1.msra.mxu0 0.0
      %188 = vmatprep.subr.mxu0 0.0
      %189 = vmatpush1.msra.mxu0 0.0
      %190 = vmatprep.subr.mxu0 0.0
      %191 = vmatpush1.msra.mxu0 0.0
      %192 = vmatprep.subr.mxu0 0.0
      %193 = vmatpush1.msra.mxu0 0.0
      %194 = vmatprep.subr.mxu0 0.0
      %195 = vmatpush1.msra.mxu0 0.0
      %196 = vmatprep.subr.mxu0 0.0
      %197 = vmatpush1.msra.mxu0 0.0
      %198 = vmatprep.subr.mxu0 0.0
      %199 = vmatpush1.msra.mxu0 0.0
      %200 = vmatprep.subr.mxu0 0.0
      %201 = vmatpush1.msra.mxu0 0.0
      %202 = vmatprep.subr.mxu0 0.0
      %203 = vmatpush1.msra.mxu0 %v174
      %204 = vmatprep.subr.mxu0 0.0
      %205 = vmatpush1.msra.mxu0 %v173
      %206 = vmatprep.subr.mxu0 0.0
      %207 = vmatpush1.msra.mxu0 %v172
      %208 = vmatprep.subr.mxu0 0.0
      %209 = vmatpush1.msra.mxu0 %v171
      %210 = vmatprep.subr.mxu0 0.0
      %211 = vmatpush1.msra.mxu0 %v170
      %212 = vmatprep.subr.mxu0 0.0
      %213 = vmatpush1.msra.mxu0 %v169
      %214 = vmatprep.subr.mxu0 0.0
      %215 = vmatpush1.msra.mxu0 %v168
      %216 = vmatprep.subr.mxu0 0.0
      %217 = vmatpush1.msra.mxu0 %v167
      %218 = vmatprep.subr.mxu0 0.0
      %219 = vmatpush2.msra.mxu0 0.0
      %220 = vmatprep.subr.mxu0 0.0
      %221 = vmatpush2.msra.mxu0 0.0
      %222 = vmatprep.subr.mxu0 0.0
      %223 = vmatpush2.msra.mxu0 0.0
      %224 = vmatprep.subr.mxu0 0.0
      %225 = vmatpush2.msra.mxu0 0.0
      %226 = vmatprep.subr.mxu0 0.0
      %227 = vmatpush2.msra.mxu0 0.0
      %228 = vmatprep.subr.mxu0 0.0
      %229 = vmatpush2.msra.mxu0 0.0
      %230 = vmatprep.subr.mxu0 0.0
      %231 = vmatpush2.msra.mxu0 0.0
      %232 = vmatprep.subr.mxu0 0.0
      %233 = vmatpush2.msra.mxu0 0.0
      %234 = vmatprep.subr.mxu0 0.0
      %235 = vmatpush2.msra.mxu0 0.0
      %236 = vmatprep.subr.mxu0 0.0
      %237 = vmatpush2.msra.mxu0 0.0
      %238 = vmatprep.subr.mxu0 0.0
      %239 = vmatpush2.msra.mxu0 0.0
      %240 = vmatprep.subr.mxu0 0.0
      %241 = vmatpush2.msra.mxu0 0.0
      %242 = vmatprep.subr.mxu0 0.0
      %243 = vmatpush2.msra.mxu0 0.0
      %244 = vmatprep.subr.mxu0 0.0
      %245 = vmatpush2.msra.mxu0 0.0
      %246 = vmatprep.subr.mxu0 0.0
      %247 = vmatpush2.msra.mxu0 0.0
      %248 = vmatprep.subr.mxu0 0.0
      %249 = vmatpush2.msra.mxu0 0.0
      %250 = vmatprep.mubr.f32.mxu0 0.0
      %251 = vmatmul.mubr.f32.gmra.mxu0 %v184
      %v252 = vpop.f32.mrf.mxu0
      %v253 = vadd.f32 %v180, %v252
      %v254 = vpop.f32.mrf.mxu0
      %255 = vdwg.mxu0
      %257 = vrot.lane.b32.xlu0 %v253, 1
      %v258 = vpop.permute.xlu0 %257
      %v260 = vsub.f32 %v253, %v258
      %v261 = vsub.f32 0.0, %v260
      %v262 = vmul.f32 %v261, 1.442695
      %v263 = vpow.pop %v262
      %v264 = vadd.f32 %v263, 1.0
      %v265 = vrcp.pop %v264
      %v266 = vmul.f32 1.0, %v265
      %268 = vset.pattern.permute.xlu0 1
      %269 = vperm.xlu0 %268, %v266
      %v270 = vpop.permute.xlu0 %269
      %v272 = vsub.f32 1.0, %v266
      %274 = vset.pattern.permute.xlu0 1
      %275 = vperm.xlu0 %274, %v272
      %v276 = vpop.permute.xlu0 %275
      %v278 = vlaneseq
      %v279 = vand.u32 %v278, 127
      %vm280 = vcmp.eq.s32.totalorder %v279, 1
      %v281 = vsel %vm280, %v270, %v276
      %vm282 = vcmask 15360
      %283 = vst.msk [vmem:[%s165] sm:$0xff] %vm282, %v281
      %p284 = scmp.lt.s32.totalorder %s14, 1
      %s285 = scalar_select %p284, %s14, 1
      %s286 = smul.addr %s285, 8
      %s287 = scalar_lea.vmem %s3, %s286
      // Predicated region
      $region33: #{tpu_custom_call.1} parent=31 // pred_check
        %p288 = pneg %p100
      $region34: #{tpu_custom_call.1} parent=31 // pred_check_branch
        %290 = sbr.rel (%p288) target = $region36
      $region35: #{tpu_custom_call.1} parent=31 // pred_region
        _
      $region36: #{tpu_custom_call.1} parent=31 // pred_fallthru
        _
    $region32: #{tpu_custom_call.1} parent=5 // pred_fallthru
      _
    %p291 = scmp.le.s32.totalorder 2, %s9
    // Predicated region
    $region37: #{tpu_custom_call.1} parent=5 // pred_check
      %p292 = pneg %p291
    $region38: #{tpu_custom_call.1} parent=5 // pred_check_branch
      %294 = sbr.rel (%p292) target = $region40
    $region39: #{tpu_custom_call.1} parent=5 // pred_region
      %s295 = ssub.s32 %s9, 2
      // Predicated region
      $region41: #{tpu_custom_call.1} parent=39 // pred_check
        %p296 = pneg %p106
      $region42: #{tpu_custom_call.1} parent=39 // pred_check_branch
        %298 = sbr.rel (%p296) target = $region44
      $region43: #{tpu_custom_call.1} parent=39 // pred_region
        %p299 = scmp.lt.s32.totalorder %s15, 1
        %s300 = scalar_select %p299, %s15, 1
        %s301 = smul.addr %s300, 8
        %s302 = scalar_lea.vmem %s3, %s301
      $region44: #{tpu_custom_call.1} parent=39 // pred_fallthru
        _
    $region40: #{tpu_custom_call.1} parent=5 // pred_fallthru
      _
  $region6: #{tpu_custom_call.1} parent=0 // loop_footer
    %s13 = sadd.s32 1, %s9
  $region7: #{tpu_custom_call.1} parent=0 // loop_footer_branch
    %8 = sbr.rel target = $region3
  $region8: #{tpu_custom_call.1} parent=0 // loop_exit
    _

</llo_original>
